<compile_context>
chip_gen: v7x
topology: tpu7x:2x2x1
jax: 0.10.0
libtpu: 0.0.40
codegen_flags: <defaults>
</compile_context>

<pallas_src>
import functools

import jax
import jax.numpy as jnp
from jax.experimental import pallas as pl
from jax.experimental.pallas import tpu as pltpu


def _edge_agg_kernel(ht_ref, xw_ref, binv_ref, m_ref):
    """Edge aggregation: M = B^{-1} (H^T @ XW) for a tile of hyperedges.

    ht_ref   : [te, N_pad]   bf16  (tile of rows of H^T, exact 0/1 entries)
    xw_ref   : [N_pad, Fp]   bf16  (full X @ W, lane-dense padded)
    binv_ref : [te, 1]       f32   (1 / edge degree, 0 where degree == 0)
    m_ref    : [te, Fp]      bf16
    """
    acc = jnp.dot(ht_ref[...], xw_ref[...], preferred_element_type=jnp.float32)
    m_ref[...] = (acc * binv_ref[...]).astype(m_ref.dtype)


def _node_agg_kernel(h_ref, m_ref, dinv_ref, b_ref, o_ref, *, relu):
    """Node aggregation: Y = D^{-1} (H @ M) + bias (+ ReLU) for a node tile.

    h_ref    : [tn, E_pad]   bf16  (tile of rows of H, exact 0/1 entries)
    m_ref    : [E_pad, Fp]   bf16  (full edge features)
    dinv_ref : [tn, 1]       f32   (1 / node degree, 0 where degree == 0)
    b_ref    : [1, Fp]       f32   (lane-padded bias)
    o_ref    : [tn, Fp]      f32
    """
    acc = jnp.dot(h_ref[...], m_ref[...], preferred_element_type=jnp.float32)
    y = acc * dinv_ref[...] + b_ref[...]
    if relu:
        y = jnp.maximum(y, 0.0)
    o_ref[...] = y.astype(o_ref.dtype)


def hgnn_forward(x, edge_index, num_edges, w1, b1, w2, b2,
                 *, node_tile=256, edge_tile=256):
    """x: [N, F_in] f32, edge_index: [2, nnz] int32 rows = (node_idx, edge_idx)."""
    n, f_in = x.shape
    hid = w1.shape[1]
    out_dim = w2.shape[1]

    def _rup(v, m):
        return ((v + m - 1) // m) * m

    n_pad = _rup(n, node_tile)
    e_pad = _rup(num_edges, edge_tile)
    hid_pad = _rup(hid, 128)
    out_pad = _rup(out_dim, 128)

    # ---- glue: padded dense incidence H + f32 inverse degrees ---------------
    # NOTE: duplicate (node, edge) pairs collapse via the idempotent .set(1.0),
    # matching the in-file reference.
    h = jnp.zeros((n_pad, e_pad), jnp.float32).at[edge_index[0], edge_index[1]].set(1.0)
    d = jnp.sum(h, axis=1, keepdims=True)                       # node degree [N_pad,1]
    b = jnp.sum(h, axis=0, keepdims=True).T                     # edge degree [E_pad,1]
    dinv = jnp.where(d > 0, 1.0 / d, 0.0)
    binv = jnp.where(b > 0, 1.0 / b, 0.0)
    h_bf = h.astype(jnp.bfloat16)                               # exact (entries are 0/1)
    ht_bf = h_bf.T                                              # [E_pad, N_pad]

    # ---- padded weights / biases (lane-dense x128 feature dims) -------------
    x_pad = jnp.zeros((n_pad, f_in), jnp.float32).at[:n, :].set(x)
    w1_p = jnp.zeros((f_in, hid_pad), jnp.float32).at[:, :hid].set(w1)
    b1_p = jnp.zeros((1, hid_pad), jnp.float32).at[0, :hid].set(b1)
    w2_p = jnp.zeros((hid_pad, out_pad), jnp.float32).at[:hid, :out_dim].set(w2)
    b2_p = jnp.zeros((1, out_pad), jnp.float32).at[0, :out_dim].set(b2)

    cparams = pltpu.CompilerParams(
        dimension_semantics=("parallel",),        # shards row tiles across v7x's 2 TCs
        vmem_limit_bytes=48 * 1024 * 1024,        # < v7x 64MiB physical, < v5e/v6e 128MiB
    )

    def edge_agg(xw_bf, fdim):
        return pl.pallas_call(
            _edge_agg_kernel,
            out_shape=jax.ShapeDtypeStruct((e_pad, fdim), jnp.bfloat16),
            grid=(e_pad // edge_tile,),
            in_specs=[
                pl.BlockSpec((edge_tile, n_pad), lambda i: (i, 0)),   # H^T row tile (streamed)
                pl.BlockSpec((n_pad, fdim), lambda i: (0, 0)),        # full XW (resident)
                pl.BlockSpec((edge_tile, 1), lambda i: (i, 0)),       # B^{-1} tile (f32)
            ],
            out_specs=pl.BlockSpec((edge_tile, fdim), lambda i: (i, 0)),
            compiler_params=cparams,
        )(ht_bf, xw_bf, binv)

    def node_agg(m_bf, fdim, bias, relu, out_dtype):
        return pl.pallas_call(
            functools.partial(_node_agg_kernel, relu=relu),
            out_shape=jax.ShapeDtypeStruct((n_pad, fdim), out_dtype),
            grid=(n_pad // node_tile,),
            in_specs=[
                pl.BlockSpec((node_tile, e_pad), lambda i: (i, 0)),   # H row tile (streamed)
                pl.BlockSpec((e_pad, fdim), lambda i: (0, 0)),        # full M (resident)
                pl.BlockSpec((node_tile, 1), lambda i: (i, 0)),       # D^{-1} tile (f32)
                pl.BlockSpec((1, fdim), lambda i: (0, 0)),            # bias (f32)
            ],
            out_specs=pl.BlockSpec((node_tile, fdim), lambda i: (i, 0)),
            compiler_params=cparams,
        )(h_bf, m_bf, dinv, bias)

    def conv(feat_f32, w_p, bias_p, fdim, relu, out_dtype):
        # Hoisted weight matmul (f32 in XLA), cast once to bf16 for the MXU stream.
        xw_bf = (feat_f32 @ w_p).astype(jnp.bfloat16)         # [N_pad, fdim]
        m_bf = edge_agg(xw_bf, fdim)                          # [E_pad, fdim]
        return node_agg(m_bf, fdim, bias_p, relu, out_dtype)  # [N_pad, fdim]

    # conv1 -> ReLU (fused) -> Dropout(0.5) [eval => identity] -> conv2
    x1 = conv(x_pad, w1_p, b1_p, hid_pad, relu=True, out_dtype=jnp.float32)
    out = conv(x1, w2_p, b2_p, out_pad, relu=False, out_dtype=jnp.float32)
    return out[:n, :out_dim]


def _glorot(key, fan_in, fan_out):
    lim = (6.0 / (fan_in + fan_out)) ** 0.5
    return jax.random.uniform(key, (fan_in, fan_out), jnp.float32, -lim, lim)


def _reference(x, edge_index, num_edges, w1, b1, w2, b2):
    """Pure-JAX f32 reference using the original H-based formulation."""
    n = x.shape[0]
    h = jnp.zeros((n, num_edges), jnp.float32).at[edge_index[0], edge_index[1]].set(1.0)
    d = jnp.sum(h, axis=1, keepdims=True)
    b = jnp.sum(h, axis=0, keepdims=True).T
    dinv = jnp.where(d > 0, 1.0 / d, 0.0)
    binv = jnp.where(b > 0, 1.0 / b, 0.0)

    def conv(xx, w, bias):
        xw = xx @ w
        ef = binv * (h.T @ xw)
        return dinv * (h @ ef) + bias

    x1 = jnp.maximum(conv(x, w1, b1), 0.0)      # dropout identity (eval)
    return conv(x1, w2, b2)


if __name__ == "__main__":
    # Small deterministic problem: 256 nodes, 16 input feats, 64 hyperedges.
    N, INPUT_DIM, HIDDEN_DIM, OUTPUT_DIM, NUM_EDGES = 256, 16, 32, 2, 64

    key = jax.random.PRNGKey(0)
    kx, k1, k2 = jax.random.split(key, 3)

    node_features = jax.random.normal(kx, (N, INPUT_DIM), jnp.float32)

    # Deterministic (node, hyperedge) membership: each node joins two edges.
    nodes = jnp.arange(N, dtype=jnp.int32)
    e_a = nodes % NUM_EDGES
    e_b = (nodes * 7 + 3) % NUM_EDGES
    edge_index = jnp.stack(
        [jnp.concatenate([nodes, nodes]), jnp.concatenate([e_a, e_b])], axis=0
    ).astype(jnp.int32)

    # Glorot weights, zero biases (as in PyG HypergraphConv).
    w1 = _glorot(k1, INPUT_DIM, HIDDEN_DIM)
    b1 = jnp.zeros((HIDDEN_DIM,), jnp.float32)
    w2 = _glorot(k2, HIDDEN_DIM, OUTPUT_DIM)
    b2 = jnp.zeros((OUTPUT_DIM,), jnp.float32)

    out = hgnn_forward(node_features, edge_index, NUM_EDGES, w1, b1, w2, b2)
    out = jax.block_until_ready(out)

    ref = _reference(node_features, edge_index, NUM_EDGES, w1, b1, w2, b2)
    assert out.shape == (N, OUTPUT_DIM)
    # H exact in bf16, normalizations + bias in f32 epilogue; only XW / M are
    # bf16-rounded MXU operands -> tighter tolerance than the old bf16-P path.
    assert jnp.allclose(out, ref, atol=2e-2, rtol=2e-2), \
        f"max abs err {float(jnp.max(jnp.abs(out - ref)))}"

    print("KERNEL_OK")
</pallas_src>

<mosaic_0001>
module attributes {stable_mosaic.version = 11 : i64} {
  func.func @_edge_agg_kernel(%arg0: i32, %arg1: memref<256x256xbf16, #tpu.memory_space<vmem>>, %arg2: memref<256x128xbf16, #tpu.memory_space<vmem>>, %arg3: memref<256x1xf32, #tpu.memory_space<vmem>>, %arg4: memref<256x128xbf16, #tpu.memory_space<vmem>>) attributes {dimension_semantics = [#tpu.dimension_semantics<parallel>], iteration_bounds = array<i64: 1>, scalar_prefetch = 0 : i64, scratch_operands = 0 : i64, tpu.core_type = #tpu.core_type<tc>, window_params = [{transform_indices = @transform_0, window_bounds = array<i64: 256, 256>}, {pipeline_mode = #tpu.pipeline_mode<synchronous>, transform_indices = @transform_1, window_bounds = array<i64: 256, 128>}, {transform_indices = @transform_2, window_bounds = array<i64: 256, 1>}, {transform_indices = @transform_3, window_bounds = array<i64: 256, 128>}]} {
    %c0 = arith.constant 0 : index
    %c0_0 = arith.constant 0 : index
    %0 = vector.load %arg1[%c0, %c0_0] : memref<256x256xbf16, #tpu.memory_space<vmem>>, vector<256x256xbf16>
    %c0_1 = arith.constant 0 : index
    %c0_2 = arith.constant 0 : index
    %1 = vector.load %arg2[%c0_1, %c0_2] : memref<256x128xbf16, #tpu.memory_space<vmem>>, vector<256x128xbf16>
    %cst = arith.constant dense<0.000000e+00> : vector<256x128xf32>
    %2 = tpu.matmul %0, %1, %cst {dimension_numbers = #tpu.dot_dimension_numbers<[1], [0], [0], [1], [0, 0, 1, 1], [], []>} : vector<256x256xbf16>, vector<256x128xbf16>, vector<256x128xf32> -> vector<256x128xf32>
    %c0_3 = arith.constant 0 : index
    %c0_4 = arith.constant 0 : index
    %3 = vector.load %arg3[%c0_3, %c0_4] : memref<256x1xf32, #tpu.memory_space<vmem>>, vector<256x1xf32>
    %4 = vector.broadcast %3 : vector<256x1xf32> to vector<256x128xf32>
    %5 = arith.mulf %2, %4 : vector<256x128xf32>
    %6 = arith.truncf %5 : vector<256x128xf32> to vector<256x128xbf16>
    %c0_5 = arith.constant 0 : index
    %c0_6 = arith.constant 0 : index
    %7 = vector.load %arg4[%c0_5, %c0_6] : memref<256x128xbf16, #tpu.memory_space<vmem>>, vector<256x128xbf16>
    tpu.vector_store %arg4[%c0_5, %c0_6], %6 {strides = array<i32>} : memref<256x128xbf16, #tpu.memory_space<vmem>>, vector<256x128xbf16>,
    return
  }
  func.func @transform_0(%arg0: i32) -> (i32, i32) {
    %c0_i32 = arith.constant 0 : i32
    %c0_i32_0 = arith.constant 0 : i32
    return %arg0, %c0_i32 : i32, i32
  }
  func.func @transform_1(%arg0: i32) -> (i32, i32) {
    %c0_i32 = arith.constant 0 : i32
    %c0_i32_0 = arith.constant 0 : i32
    %c0_i32_1 = arith.constant 0 : i32
    return %c0_i32, %c0_i32_0 : i32, i32
  }
  func.func @transform_2(%arg0: i32) -> (i32, i32) {
    %c0_i32 = arith.constant 0 : i32
    %c0_i32_0 = arith.constant 0 : i32
    return %arg0, %c0_i32 : i32, i32
  }
  func.func @transform_3(%arg0: i32) -> (i32, i32) {
    %c0_i32 = arith.constant 0 : i32
    %c0_i32_0 = arith.constant 0 : i32
    return %arg0, %c0_i32 : i32, i32
  }
}

</mosaic_0001>

<llo_original>
// kernel: tpu_custom_call.1
$region0: #{tpu_custom_call.1}
  #allocation0 [shape = 'u32[]', space=smem, size = 0x4, offset = 0x4, fixed_abs, tag = 'smem constant byte address 0x4 - core index']
  #allocation1 [shape = 'u32[144,128]{1,0:T(1,128)}', space=vmem, size = 0x12000, scoped, tag = 'internal scratch']
  %s0 = inlined_call_operand.vmem [shape: bf16[256,256], index: 0, kind: input, shape index: {}]
  %s1 = inlined_call_operand.hbm [shape: bf16[256,128], index: 1, kind: input, shape index: {}]
  %s2 = inlined_call_operand.vmem [shape: f32[256,1], index: 2, kind: input, shape index: {}]
  %s3 = inlined_call_operand.hbm [shape: bf16[256,128], index: 3, kind: output, shape index: {}]
  %s4 = sld [smem:[#allocation0]]
  $region26: #{tpu_custom_call.1} parent=0
    _
  %s6 = ssub.s32 1, %s4
  %s7 = scalar_select 0, %s6, %s4
  $region1: #{tpu_custom_call.1} parent=0
    #allocation2 [shape = 'u8[65536]{0}', space=vmem, size = 0x10000, scoped, tag = 'input window, operand 1, single buffered']
    #allocation3 [shape = 's32[1]{0}', space=sflag, size = 0x4, scoped, tag = 'scoped memory for tpu_custom_call.1']
    #allocation4 [shape = 's32[1]{0}', space=sflag, size = 0x4, scoped, tag = 'scoped memory for tpu_custom_call.1']
    #allocation5 [shape = 'u8[65536]{0}', space=vmem, size = 0x10000, scoped, tag = 'output window, operand 0, single buffered']
    %8 = vsyncpa [#allocation3], 0
    %9 = vsyncpa [#allocation4], 0
    // Predicated region
    $region2: #{tpu_custom_call.1} parent=1 // pred_check
      _
    $region3: #{tpu_custom_call.1} parent=1 // pred_check_branch
      %11 = sbr.rel (0) target = $region5
    $region4: #{tpu_custom_call.1} parent=1 // pred_region
      _
    $region5: #{tpu_custom_call.1} parent=1 // pred_fallthru
      _
    // Predicated region
    $region6: #{tpu_custom_call.1} parent=1 // pred_check
      _
    $region7: #{tpu_custom_call.1} parent=1 // pred_check_branch
      %13 = sbr.rel (0) target = $region9
    $region8: #{tpu_custom_call.1} parent=1 // pred_region
      %s15 = ssub.s32 2048, 2048
      %16 = vsyncadd [#allocation3], %s15
      %s17 = sshll.u32 [#allocation2], 4
      %s18 = int_to_ptr.vmem [resolvable:$true] %s17
      %23 = dma.hbm_to_vmem [thread:$0]  %s1, 2048, %s18, [#allocation3], 64, 64, 4
    $region9: #{tpu_custom_call.1} parent=1 // pred_fallthru
      _
    // Predicated region
    $region10: #{tpu_custom_call.1} parent=1 // pred_check
      _
    $region11: #{tpu_custom_call.1} parent=1 // pred_check_branch
      %25 = sbr.rel (0) target = $region13
    $region12: #{tpu_custom_call.1} parent=1 // pred_region
      _
    $region13: #{tpu_custom_call.1} parent=1 // pred_fallthru
      _
    // Predicated region
    $region14: #{tpu_custom_call.1} parent=1 // pred_check
      _
    $region15: #{tpu_custom_call.1} parent=1 // pred_check_branch
      %27 = sbr.rel (0) target = $region17
    $region16: #{tpu_custom_call.1} parent=1 // pred_region
      %28 = dma.done [#allocation3], 2048
    $region17: #{tpu_custom_call.1} parent=1 // pred_fallthru
      _
    %v30 = vld [vmem:[%s0] sm:$0xff]
    %v31 = vld [vmem:[%s0 + $0x8] sm:$0xff]
    %v32 = vld [vmem:[%s0 + $0x10] sm:$0xff]
    %v33 = vld [vmem:[%s0 + $0x18] sm:$0xff]
    %v34 = vld [vmem:[%s0 + $0x20] sm:$0xff]
    %v35 = vld [vmem:[%s0 + $0x28] sm:$0xff]
    %v36 = vld [vmem:[%s0 + $0x30] sm:$0xff]
    %v37 = vld [vmem:[%s0 + $0x38] sm:$0xff]
    %v38 = vld [vmem:[%s0 + $0x40] sm:$0xff]
    %v39 = vld [vmem:[%s0 + $0x48] sm:$0xff]
    %v40 = vld [vmem:[%s0 + $0x50] sm:$0xff]
    %v41 = vld [vmem:[%s0 + $0x58] sm:$0xff]
    %v42 = vld [vmem:[%s0 + $0x60] sm:$0xff]
    %v43 = vld [vmem:[%s0 + $0x68] sm:$0xff]
    %v44 = vld [vmem:[%s0 + $0x70] sm:$0xff]
    %v45 = vld [vmem:[%s0 + $0x78] sm:$0xff]
    %v46 = vld [vmem:[%s0 + $0x80] sm:$0xff]
    %v47 = vld [vmem:[%s0 + $0x88] sm:$0xff]
    %v48 = vld [vmem:[%s0 + $0x90] sm:$0xff]
    %v49 = vld [vmem:[%s0 + $0x98] sm:$0xff]
    %v50 = vld [vmem:[%s0 + $0xa0] sm:$0xff]
    %v51 = vld [vmem:[%s0 + $0xa8] sm:$0xff]
    %v52 = vld [vmem:[%s0 + $0xb0] sm:$0xff]
    %v53 = vld [vmem:[%s0 + $0xb8] sm:$0xff]
    %v54 = vld [vmem:[%s0 + $0xc0] sm:$0xff]
    %v55 = vld [vmem:[%s0 + $0xc8] sm:$0xff]
    %v56 = vld [vmem:[%s0 + $0xd0] sm:$0xff]
    %v57 = vld [vmem:[%s0 + $0xd8] sm:$0xff]
    %v58 = vld [vmem:[%s0 + $0xe0] sm:$0xff]
    %v59 = vld [vmem:[%s0 + $0xe8] sm:$0xff]
    %v60 = vld [vmem:[%s0 + $0xf0] sm:$0xff]
    %v61 = vld [vmem:[%s0 + $0xf8] sm:$0xff]
    %v62 = vld [vmem:[#allocation2] sm:$0xf]
    %v63 = vld [vmem:[#allocation2 + $0x4] sm:$0xf]
    %v64 = vld [vmem:[#allocation2 + $0x8] sm:$0xf]
    %v65 = vld [vmem:[#allocation2 + $0xc] sm:$0xf]
    %v66 = vld [vmem:[#allocation2 + $0x10] sm:$0xf]
    %v67 = vld [vmem:[#allocation2 + $0x14] sm:$0xf]
    %v68 = vld [vmem:[#allocation2 + $0x18] sm:$0xf]
    %v69 = vld [vmem:[#allocation2 + $0x1c] sm:$0xf]
    %v70 = vld [vmem:[#allocation2 + $0x20] sm:$0xf]
    %v71 = vld [vmem:[#allocation2 + $0x24] sm:$0xf]
    %v72 = vld [vmem:[#allocation2 + $0x28] sm:$0xf]
    %v73 = vld [vmem:[#allocation2 + $0x2c] sm:$0xf]
    %v74 = vld [vmem:[#allocation2 + $0x30] sm:$0xf]
    %v75 = vld [vmem:[#allocation2 + $0x34] sm:$0xf]
    %v76 = vld [vmem:[#allocation2 + $0x38] sm:$0xf]
    %v77 = vld [vmem:[#allocation2 + $0x3c] sm:$0xf]
    %v78 = vld [vmem:[#allocation2 + $0x40] sm:$0xf]
    %v79 = vld [vmem:[#allocation2 + $0x44] sm:$0xf]
    %v80 = vld [vmem:[#allocation2 + $0x48] sm:$0xf]
    %v81 = vld [vmem:[#allocation2 + $0x4c] sm:$0xf]
    %v82 = vld [vmem:[#allocation2 + $0x50] sm:$0xf]
    %v83 = vld [vmem:[#allocation2 + $0x54] sm:$0xf]
    %v84 = vld [vmem:[#allocation2 + $0x58] sm:$0xf]
    %v85 = vld [vmem:[#allocation2 + $0x5c] sm:$0xf]
    %v86 = vld [vmem:[#allocation2 + $0x60] sm:$0xf]
    %v87 = vld [vmem:[#allocation2 + $0x64] sm:$0xf]
    %v88 = vld [vmem:[#allocation2 + $0x68] sm:$0xf]
    %v89 = vld [vmem:[#allocation2 + $0x6c] sm:$0xf]
    %v90 = vld [vmem:[#allocation2 + $0x70] sm:$0xf]
    %v91 = vld [vmem:[#allocation2 + $0x74] sm:$0xf]
    %v92 = vld [vmem:[#allocation2 + $0x78] sm:$0xf]
    %v93 = vld [vmem:[#allocation2 + $0x7c] sm:$0xf]
    %v126 = vunpack.c.l.b16 %v30
    %v127 = vunpack.c.h.b16 %v30
    %v128 = vunpack.c.l.b16 %v31
    %v129 = vunpack.c.h.b16 %v31
    %v130 = vunpack.c.l.b16 %v32
    %v131 = vunpack.c.h.b16 %v32
    %v132 = vunpack.c.l.b16 %v33
    %v133 = vunpack.c.h.b16 %v33
    %v134 = vunpack.c.l.b16 %v34
    %v135 = vunpack.c.h.b16 %v34
    %v136 = vunpack.c.l.b16 %v35
    %v137 = vunpack.c.h.b16 %v35
    %v138 = vunpack.c.l.b16 %v36
    %v139 = vunpack.c.h.b16 %v36
    %v140 = vunpack.c.l.b16 %v37
    %v141 = vunpack.c.h.b16 %v37
    %v142 = vunpack.c.l.b16 %v38
    %v143 = vunpack.c.h.b16 %v38
    %v144 = vunpack.c.l.b16 %v39
    %v145 = vunpack.c.h.b16 %v39
    %v146 = vunpack.c.l.b16 %v40
    %v147 = vunpack.c.h.b16 %v40
    %v148 = vunpack.c.l.b16 %v41
    %v149 = vunpack.c.h.b16 %v41
    %v150 = vunpack.c.l.b16 %v42
    %v151 = vunpack.c.h.b16 %v42
    %v152 = vunpack.c.l.b16 %v43
    %v153 = vunpack.c.h.b16 %v43
    %v154 = vunpack.c.l.b16 %v44
    %v155 = vunpack.c.h.b16 %v44
    %v156 = vunpack.c.l.b16 %v45
    %v157 = vunpack.c.h.b16 %v45
    %v158 = vunpack.c.l.b16 %v46
    %v159 = vunpack.c.h.b16 %v46
    %v160 = vunpack.c.l.b16 %v47
    %v161 = vunpack.c.h.b16 %v47
    %v162 = vunpack.c.l.b16 %v48
    %v163 = vunpack.c.h.b16 %v48
    %v164 = vunpack.c.l.b16 %v49
    %v165 = vunpack.c.h.b16 %v49
    %v166 = vunpack.c.l.b16 %v50
    %v167 = vunpack.c.h.b16 %v50
    %v168 = vunpack.c.l.b16 %v51
    %v169 = vunpack.c.h.b16 %v51
    %v170 = vunpack.c.l.b16 %v52
    %v171 = vunpack.c.h.b16 %v52
    %v172 = vunpack.c.l.b16 %v53
    %v173 = vunpack.c.h.b16 %v53
    %v174 = vunpack.c.l.b16 %v54
    %v175 = vunpack.c.h.b16 %v54
    %v176 = vunpack.c.l.b16 %v55
    %v177 = vunpack.c.h.b16 %v55
    %v178 = vunpack.c.l.b16 %v56
    %v179 = vunpack.c.h.b16 %v56
    %v180 = vunpack.c.l.b16 %v57
    %v181 = vunpack.c.h.b16 %v57
    %v182 = vunpack.c.l.b16 %v58
    %v183 = vunpack.c.h.b16 %v58
    %v184 = vunpack.c.l.b16 %v59
    %v185 = vunpack.c.h.b16 %v59
    %v186 = vunpack.c.l.b16 %v60
    %v187 = vunpack.c.h.b16 %v60
    %v188 = vunpack.c.l.b16 %v61
    %v189 = vunpack.c.h.b16 %v61
    %v190 = vpack.c.b16 %v128, %v126
    %v191 = vpack.c.b16 %v129, %v127
    %v192 = vpack.c.b16 %v132, %v130
    %v193 = vpack.c.b16 %v133, %v131
    %v194 = vpack.c.b16 %v136, %v134
    %v195 = vpack.c.b16 %v137, %v135
    %v196 = vpack.c.b16 %v140, %v138
    %v197 = vpack.c.b16 %v141, %v139
    %v198 = vpack.c.b16 %v144, %v142
    %v199 = vpack.c.b16 %v145, %v143
    %v200 = vpack.c.b16 %v148, %v146
    %v201 = vpack.c.b16 %v149, %v147
    %v202 = vpack.c.b16 %v152, %v150
    %v203 = vpack.c.b16 %v153, %v151
    %v204 = vpack.c.b16 %v156, %v154
    %v205 = vpack.c.b16 %v157, %v155
    %v206 = vpack.c.b16 %v160, %v158
    %v207 = vpack.c.b16 %v161, %v159
    %v208 = vpack.c.b16 %v164, %v162
    %v209 = vpack.c.b16 %v165, %v163
    %v210 = vpack.c.b16 %v168, %v166
    %v211 = vpack.c.b16 %v169, %v167
    %v212 = vpack.c.b16 %v172, %v170
    %v213 = vpack.c.b16 %v173, %v171
    %v214 = vpack.c.b16 %v176, %v174
    %v215 = vpack.c.b16 %v177, %v175
    %v216 = vpack.c.b16 %v180, %v178
    %v217 = vpack.c.b16 %v181, %v179
    %v218 = vpack.c.b16 %v184, %v182
    %v219 = vpack.c.b16 %v185, %v183
    %v220 = vpack.c.b16 %v188, %v186
    %v221 = vpack.c.b16 %v189, %v187
    %v286 = vunpack.c.l.b16 %v62
    %v287 = vunpack.c.l.b16 %v63
    %v288 = vunpack.c.l.b16 %v64
    %v289 = vunpack.c.l.b16 %v65
    %v290 = vunpack.c.l.b16 %v66
    %v291 = vunpack.c.l.b16 %v67
    %v292 = vunpack.c.l.b16 %v68
    %v293 = vunpack.c.l.b16 %v69
    %v294 = vunpack.c.l.b16 %v70
    %v295 = vunpack.c.l.b16 %v71
    %v296 = vunpack.c.l.b16 %v72
    %v297 = vunpack.c.l.b16 %v73
    %v298 = vunpack.c.l.b16 %v74
    %v299 = vunpack.c.l.b16 %v75
    %v300 = vunpack.c.l.b16 %v76
    %v301 = vunpack.c.l.b16 %v77
    %v302 = vunpack.c.l.b16 %v78
    %v303 = vunpack.c.l.b16 %v79
    %v304 = vunpack.c.l.b16 %v80
    %v305 = vunpack.c.l.b16 %v81
    %v306 = vunpack.c.l.b16 %v82
    %v307 = vunpack.c.l.b16 %v83
    %v308 = vunpack.c.l.b16 %v84
    %v309 = vunpack.c.l.b16 %v85
    %v310 = vunpack.c.l.b16 %v86
    %v311 = vunpack.c.l.b16 %v87
    %v312 = vunpack.c.l.b16 %v88
    %v313 = vunpack.c.l.b16 %v89
    %v314 = vunpack.c.l.b16 %v90
    %v315 = vunpack.c.l.b16 %v91
    %v316 = vunpack.c.l.b16 %v92
    %v317 = vunpack.c.l.b16 %v93
    %v318 = vpack.c.b16 %v287, %v286
    %v319 = vpack.c.b16 %v289, %v288
    %v320 = vpack.c.b16 %v291, %v290
    %v321 = vpack.c.b16 %v293, %v292
    %v322 = vpack.c.b16 %v295, %v294
    %v323 = vpack.c.b16 %v297, %v296
    %v324 = vpack.c.b16 %v299, %v298
    %v325 = vpack.c.b16 %v301, %v300
    %v326 = vpack.c.b16 %v303, %v302
    %v327 = vpack.c.b16 %v305, %v304
    %v328 = vpack.c.b16 %v307, %v306
    %v329 = vpack.c.b16 %v309, %v308
    %v330 = vpack.c.b16 %v311, %v310
    %v331 = vpack.c.b16 %v313, %v312
    %v332 = vpack.c.b16 %v315, %v314
    %v333 = vpack.c.b16 %v317, %v316
    %350 = vmatprep.subr.bf16.mxu0 0
    %351 = vmatpush1.bf16.msra.mxu0 %v318
    %352 = vmatprep.subr.bf16.mxu0 0
    %353 = vmatpush1.bf16.msra.mxu0 %v319
    %354 = vmatprep.subr.bf16.mxu0 0
    %355 = vmatpush1.bf16.msra.mxu0 %v320
    %356 = vmatprep.subr.bf16.mxu0 0
    %357 = vmatpush1.bf16.msra.mxu0 %v321
    %358 = vmatprep.subr.bf16.mxu0 0
    %359 = vmatpush1.bf16.msra.mxu0 %v322
    %360 = vmatprep.subr.bf16.mxu0 0
    %361 = vmatpush1.bf16.msra.mxu0 %v323
    %362 = vmatprep.subr.bf16.mxu0 0
    %363 = vmatpush1.bf16.msra.mxu0 %v324
    %364 = vmatprep.subr.bf16.mxu0 0
    %365 = vmatpush1.bf16.msra.mxu0 %v325
    %366 = vmatprep.subr.bf16.mxu0 0
    %367 = vmatpush1.bf16.msra.mxu0 %v326
    %368 = vmatprep.subr.bf16.mxu0 0
    %369 = vmatpush1.bf16.msra.mxu0 %v327
    %370 = vmatprep.subr.bf16.mxu0 0
    %371 = vmatpush1.bf16.msra.mxu0 %v328
    %372 = vmatprep.subr.bf16.mxu0 0
    %373 = vmatpush1.bf16.msra.mxu0 %v329
    %374 = vmatprep.subr.bf16.mxu0 0
    %375 = vmatpush1.bf16.msra.mxu0 %v330
    %376 = vmatprep.subr.bf16.mxu0 0
    %377 = vmatpush1.bf16.msra.mxu0 %v331
    %378 = vmatprep.subr.bf16.mxu0 0
    %379 = vmatpush1.bf16.msra.mxu0 %v332
    %380 = vmatprep.subr.bf16.mxu0 0
    %381 = vmatpush1.bf16.msra.mxu0 %v333
    %382 = vmatprep.mubr.bf16.mxu0 %v191
    %383 = vmatmul.mubr.bf16.gmra.mrb[0].mxu0 %v190
    %v384 = vpop.f32.mrb[0].mxu0
    %v385 = vadd.f32 0.0, %v384
    %v386 = vpop.f32.mrb[0].mxu0
    %v387 = vpop.f32.mrb[0].mxu0
    %v388 = vadd.f32 0.0, %v387
    %v389 = vpop.f32.mrb[0].mxu0
    %390 = vmatprep.mubr.bf16.mxu0 %v193
    %391 = vmatmul.mubr.bf16.gmra.mrb[0].mxu0 %v192
    %v392 = vpop.f32.mrb[0].mxu0
    %v393 = vadd.f32 0.0, %v392
    %v394 = vpop.f32.mrb[0].mxu0
    %v395 = vpop.f32.mrb[0].mxu0
    %v396 = vadd.f32 0.0, %v395
    %v397 = vpop.f32.mrb[0].mxu0
    %398 = vmatprep.mubr.bf16.mxu0 %v195
    %399 = vmatmul.mubr.bf16.gmra.mrb[0].mxu0 %v194
    %v400 = vpop.f32.mrb[0].mxu0
    %v401 = vadd.f32 0.0, %v400
    %v402 = vpop.f32.mrb[0].mxu0
    %v403 = vpop.f32.mrb[0].mxu0
    %v404 = vadd.f32 0.0, %v403
    %v405 = vpop.f32.mrb[0].mxu0
    %406 = vmatprep.mubr.bf16.mxu0 %v197
    %407 = vmatmul.mubr.bf16.gmra.mrb[0].mxu0 %v196
    %v408 = vpop.f32.mrb[0].mxu0
    %v409 = vadd.f32 0.0, %v408
    %v410 = vpop.f32.mrb[0].mxu0
    %v411 = vpop.f32.mrb[0].mxu0
    %v412 = vadd.f32 0.0, %v411
    %v413 = vpop.f32.mrb[0].mxu0
    %414 = vmatprep.mubr.bf16.mxu0 %v199
    %415 = vmatmul.mubr.bf16.gmra.mrb[0].mxu0 %v198
    %v416 = vpop.f32.mrb[0].mxu0
    %v417 = vadd.f32 0.0, %v416
    %v418 = vpop.f32.mrb[0].mxu0
    %v419 = vpop.f32.mrb[0].mxu0
    %v420 = vadd.f32 0.0, %v419
    %v421 = vpop.f32.mrb[0].mxu0
    %422 = vmatprep.mubr.bf16.mxu0 %v201
    %423 = vmatmul.mubr.bf16.gmra.mrb[0].mxu0 %v200
    %v424 = vpop.f32.mrb[0].mxu0
    %v425 = vadd.f32 0.0, %v424
    %v426 = vpop.f32.mrb[0].mxu0
    %v427 = vpop.f32.mrb[0].mxu0
    %v428 = vadd.f32 0.0, %v427
    %v429 = vpop.f32.mrb[0].mxu0
    %430 = vmatprep.mubr.bf16.mxu0 %v203
    %431 = vmatmul.mubr.bf16.gmra.mrb[0].mxu0 %v202
    %v432 = vpop.f32.mrb[0].mxu0
    %v433 = vadd.f32 0.0, %v432
    %v434 = vpop.f32.mrb[0].mxu0
    %v435 = vpop.f32.mrb[0].mxu0
    %v436 = vadd.f32 0.0, %v435
    %v437 = vpop.f32.mrb[0].mxu0
    %438 = vmatprep.mubr.bf16.mxu0 %v205
    %439 = vmatmul.mubr.bf16.gmra.mrb[0].mxu0 %v204
    %v440 = vpop.f32.mrb[0].mxu0
    %v441 = vadd.f32 0.0, %v440
    %v442 = vpop.f32.mrb[0].mxu0
    %v443 = vpop.f32.mrb[0].mxu0
    %v444 = vadd.f32 0.0, %v443
    %v445 = vpop.f32.mrb[0].mxu0
    %446 = vmatprep.mubr.bf16.mxu0 %v207
    %447 = vmatmul.mubr.bf16.gmra.mrb[0].mxu0 %v206
    %v448 = vpop.f32.mrb[0].mxu0
    %v449 = vadd.f32 0.0, %v448
    %v450 = vpop.f32.mrb[0].mxu0
    %v451 = vpop.f32.mrb[0].mxu0
    %v452 = vadd.f32 0.0, %v451
    %v453 = vpop.f32.mrb[0].mxu0
    %454 = vmatprep.mubr.bf16.mxu0 %v209
    %455 = vmatmul.mubr.bf16.gmra.mrb[0].mxu0 %v208
    %v456 = vpop.f32.mrb[0].mxu0
    %v457 = vadd.f32 0.0, %v456
    %v458 = vpop.f32.mrb[0].mxu0
    %v459 = vpop.f32.mrb[0].mxu0
    %v460 = vadd.f32 0.0, %v459
    %v461 = vpop.f32.mrb[0].mxu0
    %462 = vmatprep.mubr.bf16.mxu0 %v211
    %463 = vmatmul.mubr.bf16.gmra.mrb[0].mxu0 %v210
    %v464 = vpop.f32.mrb[0].mxu0
    %v465 = vadd.f32 0.0, %v464
    %v466 = vpop.f32.mrb[0].mxu0
    %v467 = vpop.f32.mrb[0].mxu0
    %v468 = vadd.f32 0.0, %v467
    %v469 = vpop.f32.mrb[0].mxu0
    %470 = vmatprep.mubr.bf16.mxu0 %v213
    %471 = vmatmul.mubr.bf16.gmra.mrb[0].mxu0 %v212
    %v472 = vpop.f32.mrb[0].mxu0
    %v473 = vadd.f32 0.0, %v472
    %v474 = vpop.f32.mrb[0].mxu0
    %v475 = vpop.f32.mrb[0].mxu0
    %v476 = vadd.f32 0.0, %v475
    %v477 = vpop.f32.mrb[0].mxu0
    %478 = vmatprep.mubr.bf16.mxu0 %v215
    %479 = vmatmul.mubr.bf16.gmra.mrb[0].mxu0 %v214
    %v480 = vpop.f32.mrb[0].mxu0
    %v481 = vadd.f32 0.0, %v480
    %v482 = vpop.f32.mrb[0].mxu0
    %v483 = vpop.f32.mrb[0].mxu0
    %v484 = vadd.f32 0.0, %v483
    %v485 = vpop.f32.mrb[0].mxu0
    %486 = vmatprep.mubr.bf16.mxu0 %v217
    %487 = vmatmul.mubr.bf16.gmra.mrb[0].mxu0 %v216
    %v488 = vpop.f32.mrb[0].mxu0
    %v489 = vadd.f32 0.0, %v488
    %v490 = vpop.f32.mrb[0].mxu0
    %v491 = vpop.f32.mrb[0].mxu0
    %v492 = vadd.f32 0.0, %v491
    %v493 = vpop.f32.mrb[0].mxu0
    %494 = vmatprep.mubr.bf16.mxu0 %v219
    %495 = vmatmul.mubr.bf16.gmra.mrb[0].mxu0 %v218
    %v496 = vpop.f32.mrb[0].mxu0
    %v497 = vadd.f32 0.0, %v496
    %v498 = vpop.f32.mrb[0].mxu0
    %v499 = vpop.f32.mrb[0].mxu0
    %v500 = vadd.f32 0.0, %v499
    %v501 = vpop.f32.mrb[0].mxu0
    %502 = vmatprep.mubr.bf16.mxu0 %v221
    %503 = vmatmul.mubr.bf16.gmra.mrb[0].mxu0 %v220
    %v504 = vpop.f32.mrb[0].mxu0
    %v505 = vadd.f32 0.0, %v504
    %v506 = vpop.f32.mrb[0].mxu0
    %v507 = vpop.f32.mrb[0].mxu0
    %v508 = vadd.f32 0.0, %v507
    %v509 = vpop.f32.mrb[0].mxu0
    %510 = vdwg.mxu0
    %v511 = vld [vmem:[%s2] sm:$0xff]
    %v512 = vld [vmem:[%s2 + $0x8] sm:$0xff]
    %v513 = vld [vmem:[%s2 + $0x10] sm:$0xff]
    %v514 = vld [vmem:[%s2 + $0x18] sm:$0xff]
    %v515 = vld [vmem:[%s2 + $0x20] sm:$0xff]
    %v516 = vld [vmem:[%s2 + $0x28] sm:$0xff]
    %v517 = vld [vmem:[%s2 + $0x30] sm:$0xff]
    %v518 = vld [vmem:[%s2 + $0x38] sm:$0xff]
    %v519 = vld [vmem:[%s2 + $0x40] sm:$0xff]
    %v520 = vld [vmem:[%s2 + $0x48] sm:$0xff]
    %v521 = vld [vmem:[%s2 + $0x50] sm:$0xff]
    %v522 = vld [vmem:[%s2 + $0x58] sm:$0xff]
    %v523 = vld [vmem:[%s2 + $0x60] sm:$0xff]
    %v524 = vld [vmem:[%s2 + $0x68] sm:$0xff]
    %v525 = vld [vmem:[%s2 + $0x70] sm:$0xff]
    %v526 = vld [vmem:[%s2 + $0x78] sm:$0xff]
    %v527 = vld [vmem:[%s2 + $0x80] sm:$0xff]
    %v528 = vld [vmem:[%s2 + $0x88] sm:$0xff]
    %v529 = vld [vmem:[%s2 + $0x90] sm:$0xff]
    %v530 = vld [vmem:[%s2 + $0x98] sm:$0xff]
    %v531 = vld [vmem:[%s2 + $0xa0] sm:$0xff]
    %v532 = vld [vmem:[%s2 + $0xa8] sm:$0xff]
    %v533 = vld [vmem:[%s2 + $0xb0] sm:$0xff]
    %v534 = vld [vmem:[%s2 + $0xb8] sm:$0xff]
    %v535 = vld [vmem:[%s2 + $0xc0] sm:$0xff]
    %v536 = vld [vmem:[%s2 + $0xc8] sm:$0xff]
    %v537 = vld [vmem:[%s2 + $0xd0] sm:$0xff]
    %v538 = vld [vmem:[%s2 + $0xd8] sm:$0xff]
    %v539 = vld [vmem:[%s2 + $0xe0] sm:$0xff]
    %v540 = vld [vmem:[%s2 + $0xe8] sm:$0xff]
    %v541 = vld [vmem:[%s2 + $0xf0] sm:$0xff]
    %v542 = vld [vmem:[%s2 + $0xf8] sm:$0xff]
    %544 = vset.pattern.permute.xlu0 0
    %545 = vperm.xlu0 %544, %v511
    %v546 = vpop.permute.xlu0 %545
    %549 = vset.pattern.permute.xlu0 0
    %550 = vperm.xlu0 %549, %v512
    %v551 = vpop.permute.xlu0 %550
    %554 = vset.pattern.permute.xlu0 0
    %555 = vperm.xlu0 %554, %v513
    %v556 = vpop.permute.xlu0 %555
    %559 = vset.pattern.permute.xlu0 0
    %560 = vperm.xlu0 %559, %v514
    %v561 = vpop.permute.xlu0 %560
    %564 = vset.pattern.permute.xlu0 0
    %565 = vperm.xlu0 %564, %v515
    %v566 = vpop.permute.xlu0 %565
    %569 = vset.pattern.permute.xlu0 0
    %570 = vperm.xlu0 %569, %v516
    %v571 = vpop.permute.xlu0 %570
    %574 = vset.pattern.permute.xlu0 0
    %575 = vperm.xlu0 %574, %v517
    %v576 = vpop.permute.xlu0 %575
    %579 = vset.pattern.permute.xlu0 0
    %580 = vperm.xlu0 %579, %v518
    %v581 = vpop.permute.xlu0 %580
    %584 = vset.pattern.permute.xlu0 0
    %585 = vperm.xlu0 %584, %v519
    %v586 = vpop.permute.xlu0 %585
    %589 = vset.pattern.permute.xlu0 0
    %590 = vperm.xlu0 %589, %v520
    %v591 = vpop.permute.xlu0 %590
    %594 = vset.pattern.permute.xlu0 0
    %595 = vperm.xlu0 %594, %v521
    %v596 = vpop.permute.xlu0 %595
    %599 = vset.pattern.permute.xlu0 0
    %600 = vperm.xlu0 %599, %v522
    %v601 = vpop.permute.xlu0 %600
    %604 = vset.pattern.permute.xlu0 0
    %605 = vperm.xlu0 %604, %v523
    %v606 = vpop.permute.xlu0 %605
    %609 = vset.pattern.permute.xlu0 0
    %610 = vperm.xlu0 %609, %v524
    %v611 = vpop.permute.xlu0 %610
    %614 = vset.pattern.permute.xlu0 0
    %615 = vperm.xlu0 %614, %v525
    %v616 = vpop.permute.xlu0 %615
    %619 = vset.pattern.permute.xlu0 0
    %620 = vperm.xlu0 %619, %v526
    %v621 = vpop.permute.xlu0 %620
    %624 = vset.pattern.permute.xlu0 0
    %625 = vperm.xlu0 %624, %v527
    %v626 = vpop.permute.xlu0 %625
    %629 = vset.pattern.permute.xlu0 0
    %630 = vperm.xlu0 %629, %v528
    %v631 = vpop.permute.xlu0 %630
    %634 = vset.pattern.permute.xlu0 0
    %635 = vperm.xlu0 %634, %v529
    %v636 = vpop.permute.xlu0 %635
    %639 = vset.pattern.permute.xlu0 0
    %640 = vperm.xlu0 %639, %v530
    %v641 = vpop.permute.xlu0 %640
    %644 = vset.pattern.permute.xlu0 0
    %645 = vperm.xlu0 %644, %v531
    %v646 = vpop.permute.xlu0 %645
    %649 = vset.pattern.permute.xlu0 0
    %650 = vperm.xlu0 %649, %v532
    %v651 = vpop.permute.xlu0 %650
    %654 = vset.pattern.permute.xlu0 0
    %655 = vperm.xlu0 %654, %v533
    %v656 = vpop.permute.xlu0 %655
    %659 = vset.pattern.permute.xlu0 0
    %660 = vperm.xlu0 %659, %v534
    %v661 = vpop.permute.xlu0 %660
    %664 = vset.pattern.permute.xlu0 0
    %665 = vperm.xlu0 %664, %v535
    %v666 = vpop.permute.xlu0 %665
    %669 = vset.pattern.permute.xlu0 0
    %670 = vperm.xlu0 %669, %v536
    %v671 = vpop.permute.xlu0 %670
    %674 = vset.pattern.permute.xlu0 0
    %675 = vperm.xlu0 %674, %v537
    %v676 = vpop.permute.xlu0 %675
    %679 = vset.pattern.permute.xlu0 0
    %680 = vperm.xlu0 %679, %v538
    %v681 = vpop.permute.xlu0 %680
    %684 = vset.pattern.permute.xlu0 0
    %685 = vperm.xlu0 %684, %v539
    %v686 = vpop.permute.xlu0 %685
    %689 = vset.pattern.permute.xlu0 0
    %690 = vperm.xlu0 %689, %v540
    %v691 = vpop.permute.xlu0 %690
    %694 = vset.pattern.permute.xlu0 0
    %695 = vperm.xlu0 %694, %v541
    %v696 = vpop.permute.xlu0 %695
    %699 = vset.pattern.permute.xlu0 0
    %700 = vperm.xlu0 %699, %v542
    %v701 = vpop.permute.xlu0 %700
    %v703 = vmul.f32 %v385, %v546
    %v704 = vmul.f32 %v388, %v551
    %v705 = vmul.f32 %v393, %v556
    %v706 = vmul.f32 %v396, %v561
    %v707 = vmul.f32 %v401, %v566
    %v708 = vmul.f32 %v404, %v571
    %v709 = vmul.f32 %v409, %v576
    %v710 = vmul.f32 %v412, %v581
    %v711 = vmul.f32 %v417, %v586
    %v712 = vmul.f32 %v420, %v591
    %v713 = vmul.f32 %v425, %v596
    %v714 = vmul.f32 %v428, %v601
    %v715 = vmul.f32 %v433, %v606
    %v716 = vmul.f32 %v436, %v611
    %v717 = vmul.f32 %v441, %v616
    %v718 = vmul.f32 %v444, %v621
    %v719 = vmul.f32 %v449, %v626
    %v720 = vmul.f32 %v452, %v631
    %v721 = vmul.f32 %v457, %v636
    %v722 = vmul.f32 %v460, %v641
    %v723 = vmul.f32 %v465, %v646
    %v724 = vmul.f32 %v468, %v651
    %v725 = vmul.f32 %v473, %v656
    %v726 = vmul.f32 %v476, %v661
    %v727 = vmul.f32 %v481, %v666
    %v728 = vmul.f32 %v484, %v671
    %v729 = vmul.f32 %v489, %v676
    %v730 = vmul.f32 %v492, %v681
    %v731 = vmul.f32 %v497, %v686
    %v732 = vmul.f32 %v500, %v691
    %v733 = vmul.f32 %v505, %v696
    %v734 = vmul.f32 %v508, %v701
    %v735 = vpack.c.bf16 %v704, %v703
    %v736 = vpack.c.bf16 %v706, %v705
    %v737 = vpack.c.bf16 %v708, %v707
    %v738 = vpack.c.bf16 %v710, %v709
    %v739 = vpack.c.bf16 %v712, %v711
    %v740 = vpack.c.bf16 %v714, %v713
    %v741 = vpack.c.bf16 %v716, %v715
    %v742 = vpack.c.bf16 %v718, %v717
    %v743 = vpack.c.bf16 %v720, %v719
    %v744 = vpack.c.bf16 %v722, %v721
    %v745 = vpack.c.bf16 %v724, %v723
    %v746 = vpack.c.bf16 %v726, %v725
    %v747 = vpack.c.bf16 %v728, %v727
    %v748 = vpack.c.bf16 %v730, %v729
    %v749 = vpack.c.bf16 %v732, %v731
    %v750 = vpack.c.bf16 %v734, %v733
    %v767 = vunpack.c.l.b16 %v735
    %v768 = vunpack.c.h.b16 %v735
    %v769 = vunpack.c.l.b16 %v736
    %v770 = vunpack.c.h.b16 %v736
    %v771 = vunpack.c.l.b16 %v737
    %v772 = vunpack.c.h.b16 %v737
    %v773 = vunpack.c.l.b16 %v738
    %v774 = vunpack.c.h.b16 %v738
    %v775 = vunpack.c.l.b16 %v739
    %v776 = vunpack.c.h.b16 %v739
    %v777 = vunpack.c.l.b16 %v740
    %v778 = vunpack.c.h.b16 %v740
    %v779 = vunpack.c.l.b16 %v741
    %v780 = vunpack.c.h.b16 %v741
    %v781 = vunpack.c.l.b16 %v742
    %v782 = vunpack.c.h.b16 %v742
    %v783 = vunpack.c.l.b16 %v743
    %v784 = vunpack.c.h.b16 %v743
    %v785 = vunpack.c.l.b16 %v744
    %v786 = vunpack.c.h.b16 %v744
    %v787 = vunpack.c.l.b16 %v745
    %v788 = vunpack.c.h.b16 %v745
    %v789 = vunpack.c.l.b16 %v746
    %v790 = vunpack.c.h.b16 %v746
    %v791 = vunpack.c.l.b16 %v747
    %v792 = vunpack.c.h.b16 %v747
    %v793 = vunpack.c.l.b16 %v748
    %v794 = vunpack.c.h.b16 %v748
    %v795 = vunpack.c.l.b16 %v749
    %v796 = vunpack.c.h.b16 %v749
    %v797 = vunpack.c.l.b16 %v750
    %v798 = vunpack.c.h.b16 %v750
    %v799 = vpack.c.b16 %v767, %v767
    %v800 = vpack.c.b16 %v768, %v768
    %v801 = vpack.c.b16 %v769, %v769
    %v802 = vpack.c.b16 %v770, %v770
    %v803 = vpack.c.b16 %v771, %v771
    %v804 = vpack.c.b16 %v772, %v772
    %v805 = vpack.c.b16 %v773, %v773
    %v806 = vpack.c.b16 %v774, %v774
    %v807 = vpack.c.b16 %v775, %v775
    %v808 = vpack.c.b16 %v776, %v776
    %v809 = vpack.c.b16 %v777, %v777
    %v810 = vpack.c.b16 %v778, %v778
    %v811 = vpack.c.b16 %v779, %v779
    %v812 = vpack.c.b16 %v780, %v780
    %v813 = vpack.c.b16 %v781, %v781
    %v814 = vpack.c.b16 %v782, %v782
    %v815 = vpack.c.b16 %v783, %v783
    %v816 = vpack.c.b16 %v784, %v784
    %v817 = vpack.c.b16 %v785, %v785
    %v818 = vpack.c.b16 %v786, %v786
    %v819 = vpack.c.b16 %v787, %v787
    %v820 = vpack.c.b16 %v788, %v788
    %v821 = vpack.c.b16 %v789, %v789
    %v822 = vpack.c.b16 %v790, %v790
    %v823 = vpack.c.b16 %v791, %v791
    %v824 = vpack.c.b16 %v792, %v792
    %v825 = vpack.c.b16 %v793, %v793
    %v826 = vpack.c.b16 %v794, %v794
    %v827 = vpack.c.b16 %v795, %v795
    %v828 = vpack.c.b16 %v796, %v796
    %v829 = vpack.c.b16 %v797, %v797
    %v830 = vpack.c.b16 %v798, %v798
    %863 = vst [vmem:[#allocation5] sm:$0xf] %v799
    %864 = vst [vmem:[#allocation5 + $0x4] sm:$0xf] %v800
    %865 = vst [vmem:[#allocation5 + $0x8] sm:$0xf] %v801
    %866 = vst [vmem:[#allocation5 + $0xc] sm:$0xf] %v802
    %867 = vst [vmem:[#allocation5 + $0x10] sm:$0xf] %v803
    %868 = vst [vmem:[#allocation5 + $0x14] sm:$0xf] %v804
    %869 = vst [vmem:[#allocation5 + $0x18] sm:$0xf] %v805
    %870 = vst [vmem:[#allocation5 + $0x1c] sm:$0xf] %v806
    %871 = vst [vmem:[#allocation5 + $0x20] sm:$0xf] %v807
    %872 = vst [vmem:[#allocation5 + $0x24] sm:$0xf] %v808
    %873 = vst [vmem:[#allocation5 + $0x28] sm:$0xf] %v809
    %874 = vst [vmem:[#allocation5 + $0x2c] sm:$0xf] %v810
    %875 = vst [vmem:[#allocation5 + $0x30] sm:$0xf] %v811
    %876 = vst [vmem:[#allocation5 + $0x34] sm:$0xf] %v812
    %877 = vst [vmem:[#allocation5 + $0x38] sm:$0xf] %v813
    %878 = vst [vmem:[#allocation5 + $0x3c] sm:$0xf] %v814
    %879 = vst [vmem:[#allocation5 + $0x40] sm:$0xf] %v815
    %880 = vst [vmem:[#allocation5 + $0x44] sm:$0xf] %v816
    %881 = vst [vmem:[#allocation5 + $0x48] sm:$0xf] %v817
    %882 = vst [vmem:[#allocation5 + $0x4c] sm:$0xf] %v818
    %883 = vst [vmem:[#allocation5 + $0x50] sm:$0xf] %v819
    %884 = vst [vmem:[#allocation5 + $0x54] sm:$0xf] %v820
    %885 = vst [vmem:[#allocation5 + $0x58] sm:$0xf] %v821
    %886 = vst [vmem:[#allocation5 + $0x5c] sm:$0xf] %v822
    %887 = vst [vmem:[#allocation5 + $0x60] sm:$0xf] %v823
    %888 = vst [vmem:[#allocation5 + $0x64] sm:$0xf] %v824
    %889 = vst [vmem:[#allocation5 + $0x68] sm:$0xf] %v825
    %890 = vst [vmem:[#allocation5 + $0x6c] sm:$0xf] %v826
    %891 = vst [vmem:[#allocation5 + $0x70] sm:$0xf] %v827
    %892 = vst [vmem:[#allocation5 + $0x74] sm:$0xf] %v828
    %893 = vst [vmem:[#allocation5 + $0x78] sm:$0xf] %v829
    %894 = vst [vmem:[#allocation5 + $0x7c] sm:$0xf] %v830
    // Predicated region
    $region18: #{tpu_custom_call.1} parent=1 // pred_check
      _
    $region19: #{tpu_custom_call.1} parent=1 // pred_check_branch
      %896 = sbr.rel (0) target = $region21
    $region20: #{tpu_custom_call.1} parent=1 // pred_region
      %s898 = ssub.s32 2048, 2048
      %899 = vsyncadd [#allocation4], %s898
      %s900 = sshll.u32 [#allocation5], 4
      %s901 = int_to_ptr.vmem [resolvable:$true] %s900
      %906 = dma.vmem_to_hbm [thread:$0]  %s901, 2048, %s3, [#allocation4], 64, 64, 4
    $region21: #{tpu_custom_call.1} parent=1 // pred_fallthru
      _
    // Predicated region
    $region22: #{tpu_custom_call.1} parent=1 // pred_check
      _
    $region23: #{tpu_custom_call.1} parent=1 // pred_check_branch
      %908 = sbr.rel (0) target = $region25
    $region24: #{tpu_custom_call.1} parent=1 // pred_region
      %909 = dma.done [#allocation4], 2048
    $region25: #{tpu_custom_call.1} parent=1 // pred_fallthru
      _
    %910 = vsyncpa [#allocation3], 1
    %911 = vsyncpa [#allocation4], 1

</llo_original>
